<compile_context>
chip_gen: v6e
topology: v6e:2x2x1
jax: 0.10.0
libtpu: 0.0.40
codegen_flags: <defaults>
</compile_context>

<pallas_src>
import jax
import jax.numpy as jnp
import numpy as np
from jax.experimental import pallas as pl
from jax.experimental.pallas import tpu as pltpu


def _device_kind():
    try:
        return jax.devices()[0].device_kind.lower()
    except Exception:
        return ""


def _pick_tile(L, B, itemsize, *, max_block_bytes, vmem_budget_bytes, n_buffers=2):
    """Pick a lane tile tn (multiple of 128) for the flattened last axis.

    Budget accounts for sublane padding of the (B, tn) vertex blocks, the
    pipeline depth of both vertex inputs, the double-buffered (1, tn) weight
    row and the resident accumulator block.  Returns (tn, has_tail)."""
    sublane = {4: 8, 2: 16, 1: 32}.get(itemsize, 8)
    rows = ((B + sublane - 1) // sublane) * sublane        # sublane-padded rows
    acc_bytes = 8 * 128 * 4                                # resident (1,B,1) accumulator (1 padded vreg)
    slack = 512 << 10                                      # compiler-internal scratch headroom

    def fits(t):
        vert_block = rows * t * itemsize                   # one (B,t) tile post sublane padding
        w2_block = 8 * t * 4                               # (1,t) f32 weight tile, padded to 8 sublanes
        total = 2 * n_buffers * vert_block + 2 * w2_block + acc_bytes + slack
        return vert_block <= max_block_bytes and total <= vmem_budget_bytes

    cap = ((L + 127) // 128) * 128
    # Whole flattened axis in a single block: one grid step, no tail mask.
    if L % 128 == 0 and fits(L):
        return L, False
    # Largest 128-multiple tile within the corrected VMEM budget.
    t = 128
    while t + 128 <= cap and fits(t + 128):
        t += 128
    t_max = t
    # Prefer an exact divisor of L → no partial last block, no masking at all.
    for t in range(t_max, 127, -128):
        if L % t == 0:
            return t, False
    return t_max, True


def _make_kernel(B, tn, L, kpc, n_blocks, has_tail):
    def kernel(w2_ref, v1_ref, v2_ref, out_ref):
        p = pl.program_id(0)
        k = pl.program_id(1)

        @pl.when(k == 0)
        def _init():
            out_ref[...] = jnp.zeros_like(out_ref)

        e = v1_ref[...].astype(jnp.float32) - v2_ref[...].astype(jnp.float32)  # (B, tn)
        sq = w2_ref[...] * e * e                                               # (B, tn)

        if has_tail:
            gb = p * kpc + k                       # global lane-block index
            is_last = gb == (n_blocks - 1)

            @pl.when(jnp.logical_not(is_last))
            def _full():
                out_ref[...] += jnp.sum(sq, axis=-1, keepdims=True)[None]

            @pl.when(is_last)
            def _tail():
                # Mask AFTER computing sq: garbage (possibly NaN/Inf) lanes
                # past L must not rely on 0-weight multiplication.
                lane = jax.lax.broadcasted_iota(jnp.int32, sq.shape, 1)
                valid = (gb * tn + lane) < L
                sq_m = jnp.where(valid, sq, 0.0)
                out_ref[...] += jnp.sum(sq_m, axis=-1, keepdims=True)[None]
        else:
            out_ref[...] += jnp.sum(sq, axis=-1, keepdims=True)[None]

    return kernel


def point_to_point_loss(vertices1, vertices2, vertex_weights):
    """vertices1, vertices2: (B, N, C); vertex_weights: (N,). Returns scalar MSE."""
    B, N, C = vertices1.shape
    assert vertices2.shape == (B, N, C)
    L = N * C

    # Copy-free contiguous flatten (no transpose, no extra HBM pass).
    v1 = vertices1.reshape(B, L)
    v2 = vertices2.reshape(B, L)
    # Tiny (1, L) squared-weight row; broadcast over the B rows inside the kernel.
    w2 = jnp.square(jnp.repeat(jnp.asarray(vertex_weights, jnp.float32), C))

    kind = _device_kind()
    is_v7 = "v7" in kind                       # 2 TensorCores, 64 MiB VMEM/TC, 3.2 TB/s
    max_block_bytes = (4 << 20) if is_v7 else (2 << 20)
    vmem_limit = (48 << 20) if is_v7 else (32 << 20)
    n_buffers = 3 if is_v7 else 2

    itemsize = jnp.dtype(vertices1.dtype).itemsize
    tn, has_tail = _pick_tile(
        L, B, itemsize,
        max_block_bytes=max_block_bytes,
        vmem_budget_bytes=int(vmem_limit * 0.75),
        n_buffers=n_buffers,
    )
    n_blocks = -(-L // tn)                     # ceil(L / tn)

    # The weight row is tiny: pad it (not the vertices!) so its blocks divide.
    Lw = n_blocks * tn
    if Lw != L:
        w2 = jnp.pad(w2, (0, Lw - L))
    w2 = w2.reshape(1, Lw)

    # Split the reduction across the two TensorCores only on v7x.
    P = 2 if (is_v7 and n_blocks >= 2 and n_blocks % 2 == 0) else 1
    kpc = n_blocks // P

    kernel = _make_kernel(B, tn, L, kpc, n_blocks, has_tail)

    vert_idx = lambda p, k: (0, p * kpc + k)
    if is_v7:
        vert_specs = [pl.BlockSpec((B, tn), vert_idx, pipeline_mode=pl.Buffered(3)),
                      pl.BlockSpec((B, tn), vert_idx, pipeline_mode=pl.Buffered(3))]
    else:
        vert_specs = [pl.BlockSpec((B, tn), vert_idx),
                      pl.BlockSpec((B, tn), vert_idx)]

    sem_p = pltpu.CORE_PARALLEL if P == 2 else pltpu.ARBITRARY

    out = pl.pallas_call(
        kernel,
        out_shape=jax.ShapeDtypeStruct((P, B, 1), jnp.float32),
        grid_spec=pltpu.PrefetchScalarGridSpec(
            num_scalar_prefetch=0,
            grid=(P, kpc),
            in_specs=[pl.BlockSpec((1, tn), lambda p, k: (0, p * kpc + k))] + vert_specs,
            # Per-core partial accumulator; resident across the reduction axis.
            out_specs=pl.BlockSpec((1, B, 1), lambda p, k: (p, 0, 0)),
        ),
        compiler_params=pltpu.CompilerParams(
            dimension_semantics=(sem_p, pltpu.ARBITRARY),
            vmem_limit_bytes=vmem_limit,
        ),
    )(w2, v1, v2)

    # Final reduction over a few floats only, then the mean over true B*N*C.
    return jnp.sum(out) * (1.0 / float(B * L))


def get_vertex_weights(num_vertices):
    """Deterministic stand-in for PointToPointLoss.get_vertex_weights.

    Default path (no masks) is all-ones; two deterministic regions get
    non-unit weights to mimic mask-driven weighting.
    """
    # TODO(synk): real mask/mesh_sampler-driven weighting is host-side numpy
    # preprocessing, not a kernel op; only the weighted-MSE forward is kernelized.
    w = np.ones(num_vertices, dtype=np.float32)
    w[: num_vertices // 4] = 2.0                                        # "face"
    w[num_vertices // 2: num_vertices // 2 + num_vertices // 8] = 0.5   # "scalp"
    return w


if __name__ == "__main__":
    B, N, C = 2, 256, 3  # batch, num_vertices, xyz

    key = jax.random.PRNGKey(0)
    k1, k2 = jax.random.split(key)
    vertices1 = jax.random.normal(k1, (B, N, C), dtype=jnp.float32)
    vertices2 = jax.random.normal(k2, (B, N, C), dtype=jnp.float32)
    vertex_weights = jnp.asarray(get_vertex_weights(N))

    loss = jax.jit(point_to_point_loss)(vertices1, vertices2, vertex_weights)
    loss = jax.block_until_ready(loss)

    # Reference check (plain JAX, mirrors the PyTorch forward exactly).
    w_b = vertex_weights[None, :, None]
    ref = jnp.mean((w_b * vertices1 - w_b * vertices2) ** 2)
    assert jnp.allclose(loss, ref, rtol=1e-5, atol=1e-6), (loss, ref)

    print("KERNEL_OK")
</pallas_src>

<mosaic_0001>
module attributes {stable_mosaic.version = 11 : i64} {
  func.func @kernel(%arg0: i32, %arg1: i32, %arg2: memref<1x768xf32, #tpu.memory_space<vmem>>, %arg3: memref<2x768xf32, #tpu.memory_space<vmem>>, %arg4: memref<2x768xf32, #tpu.memory_space<vmem>>, %arg5: memref<1x2x1xf32, #tpu.memory_space<vmem>>) attributes {dimension_semantics = [#tpu.dimension_semantics<arbitrary>, #tpu.dimension_semantics<arbitrary>], iteration_bounds = array<i64: 1, 1>, scalar_prefetch = 0 : i64, scratch_operands = 0 : i64, tpu.core_type = #tpu.core_type<tc>, window_params = [{transform_indices = @transform_0, window_bounds = array<i64: 1, 768>}, {transform_indices = @transform_1, window_bounds = array<i64: 2, 768>}, {transform_indices = @transform_2, window_bounds = array<i64: 2, 768>}, {transform_indices = @transform_3, window_bounds = array<i64: 1, 2, 1>}]} {
    %c0_i32 = arith.constant 0 : i32
    %0 = arith.cmpi eq, %arg1, %c0_i32 : i32
    %1 = arith.extui %0 : i1 to i32
    %c0_i32_0 = arith.constant 0 : i32
    %2 = arith.cmpi ne, %1, %c0_i32_0 : i32
    scf.if %2 {
      %cst_12 = arith.constant 0.000000e+00 : f32
      %16 = vector.broadcast %cst_12 : f32 to vector<1x2x1xf32>
      %c0_13 = arith.constant 0 : index
      %c0_14 = arith.constant 0 : index
      %c0_15 = arith.constant 0 : index
      %17 = vector.load %arg5[%c0_13, %c0_14, %c0_15] : memref<1x2x1xf32, #tpu.memory_space<vmem>>, vector<1x2x1xf32>
      tpu.vector_store %arg5[%c0_13, %c0_14, %c0_15], %16 {strides = array<i32>} : memref<1x2x1xf32, #tpu.memory_space<vmem>>, vector<1x2x1xf32>,
    } else {
    }
    %c0 = arith.constant 0 : index
    %c0_1 = arith.constant 0 : index
    %3 = vector.load %arg3[%c0, %c0_1] : memref<2x768xf32, #tpu.memory_space<vmem>>, vector<2x768xf32>
    %c0_2 = arith.constant 0 : index
    %c0_3 = arith.constant 0 : index
    %4 = vector.load %arg4[%c0_2, %c0_3] : memref<2x768xf32, #tpu.memory_space<vmem>>, vector<2x768xf32>
    %5 = arith.subf %3, %4 : vector<2x768xf32>
    %c0_4 = arith.constant 0 : index
    %c0_5 = arith.constant 0 : index
    %6 = vector.load %arg2[%c0_4, %c0_5] : memref<1x768xf32, #tpu.memory_space<vmem>>, vector<1x768xf32>
    %7 = vector.broadcast %6 : vector<1x768xf32> to vector<2x768xf32>
    %8 = arith.mulf %7, %5 : vector<2x768xf32>
    %9 = arith.mulf %8, %5 : vector<2x768xf32>
    %c0_6 = arith.constant 0 : index
    %c0_7 = arith.constant 0 : index
    %c0_8 = arith.constant 0 : index
    %10 = vector.load %arg5[%c0_6, %c0_7, %c0_8] : memref<1x2x1xf32, #tpu.memory_space<vmem>>, vector<1x2x1xf32>
    %cst = arith.constant dense<0.000000e+00> : vector<2xf32>
    %11 = vector.multi_reduction <add>, %9, %cst [1] : vector<2x768xf32> to vector<2xf32>
    %12 = vector.shape_cast %11 : vector<2xf32> to vector<2x1xf32>
    %13 = vector.shape_cast %12 : vector<2x1xf32> to vector<1x2x1xf32>
    %14 = arith.addf %10, %13 : vector<1x2x1xf32>
    %c0_9 = arith.constant 0 : index
    %c0_10 = arith.constant 0 : index
    %c0_11 = arith.constant 0 : index
    %15 = vector.load %arg5[%c0_9, %c0_10, %c0_11] : memref<1x2x1xf32, #tpu.memory_space<vmem>>, vector<1x2x1xf32>
    tpu.vector_store %arg5[%c0_9, %c0_10, %c0_11], %14 {strides = array<i32>} : memref<1x2x1xf32, #tpu.memory_space<vmem>>, vector<1x2x1xf32>,
    return
  }
  func.func @transform_0(%arg0: i32, %arg1: i32) -> (i32, i32) {
    %c1_i32 = arith.constant 1 : i32
    %0 = arith.muli %arg0, %c1_i32 : i32
    %1 = arith.addi %0, %arg1 : i32
    %c0_i32 = arith.constant 0 : i32
    %c0_i32_0 = arith.constant 0 : i32
    return %c0_i32, %1 : i32, i32
  }
  func.func @transform_1(%arg0: i32, %arg1: i32) -> (i32, i32) {
    %c1_i32 = arith.constant 1 : i32
    %0 = arith.muli %arg0, %c1_i32 : i32
    %1 = arith.addi %0, %arg1 : i32
    %c0_i32 = arith.constant 0 : i32
    %c0_i32_0 = arith.constant 0 : i32
    return %c0_i32, %1 : i32, i32
  }
  func.func @transform_2(%arg0: i32, %arg1: i32) -> (i32, i32) {
    %c1_i32 = arith.constant 1 : i32
    %0 = arith.muli %arg0, %c1_i32 : i32
    %1 = arith.addi %0, %arg1 : i32
    %c0_i32 = arith.constant 0 : i32
    %c0_i32_0 = arith.constant 0 : i32
    return %c0_i32, %1 : i32, i32
  }
  func.func @transform_3(%arg0: i32, %arg1: i32) -> (i32, i32, i32) {
    %c0_i32 = arith.constant 0 : i32
    %c0_i32_0 = arith.constant 0 : i32
    %c0_i32_1 = arith.constant 0 : i32
    return %arg0, %c0_i32, %c0_i32_0 : i32, i32, i32
  }
}

</mosaic_0001>

<llo_original>
// kernel: square.9
$region0: #{square.9}
  #allocation0 [shape = 's32[1]{0}', space=sflag, size = 0x4, scoped, tag = 'scoped memory for square.9']
  %s0 = inlined_call_operand.vmem [shape: f32[256], index: 0, kind: input, shape index: {}, may-alias: {0,1}]
  %s1 = inlined_call_operand.vmem [shape: f32[256], index: 1, kind: input, shape index: {}, may-alias: {0,1}]
  %s2 = inlined_call_operand.vmem [shape: f32[256], index: 2, kind: output, shape index: {}]
  %v3 = vld [vmem:[%s0] sm:$0x3]
  %v4 = vld [vmem:[%s1] sm:$0x3]
  %5 = xla_tuple %v3, %v4
  %6 = xla_tuple %5
  %v7 = vmul.f32 %v3, %v4
  %8 = xla_tuple %v7
  %9 = vst [vmem:[%s2] sm:$0x3] %v7

// kernel: point_to_point_loss.1
$region0: #{point_to_point_loss.1}
  #allocation0 [shape = 'u32[]', space=smem, size = 0x4, offset = 0x4, fixed_abs, tag = 'smem constant byte address 0x4 - core index']
  #allocation1 [shape = 'u32[144,128]{1,0:T(1,128)}', space=vmem, size = 0x12000, scoped, tag = 'internal scratch']
  %s0 = inlined_call_operand.vmem [shape: f32[1,768], index: 0, kind: input, shape index: {}]
  %s1 = inlined_call_operand.vmem [shape: f32[2,768], index: 1, kind: input, shape index: {}]
  %s2 = inlined_call_operand.vmem [shape: f32[2,768], index: 2, kind: input, shape index: {}]
  %s3 = inlined_call_operand.vmem [shape: f32[1,2,1], index: 3, kind: output, shape index: {}]
  %s4 = sld [smem:[#allocation0]]
  $region26: #{point_to_point_loss.1} parent=0
    _
  %s6 = ssub.s32 1, %s4
  %s7 = scalar_select 0, %s6, %s4
  // Predicated region
  $region2: #{point_to_point_loss.1} parent=0 // pred_check
    _
  $region3: #{point_to_point_loss.1} parent=0 // pred_check_branch
    %9 = sbr.rel (0) target = $region5
  $region4: #{point_to_point_loss.1} parent=0 // pred_region
    %s10 = sadd.s32 0, 0
    %s11 = smul.u32 6, %s10
    %p12 = scmp.lt.s32.totalorder %s11, 5
    %s13 = scalar_select %p12, %s11, 5
    %s14 = scalar_lea.vmem %s0, %s13
    %s15 = sadd.s32 0, 0
    %s16 = smul.u32 6, %s15
  $region5: #{point_to_point_loss.1} parent=0 // pred_fallthru
    _
  // Predicated region
  $region6: #{point_to_point_loss.1} parent=0 // pred_check
    _
  $region7: #{point_to_point_loss.1} parent=0 // pred_check_branch
    %18 = sbr.rel (0) target = $region9
  $region8: #{point_to_point_loss.1} parent=0 // pred_region
    %s19 = sadd.s32 0, 0
    %s20 = smul.u32 6, %s19
    %p21 = scmp.lt.s32.totalorder %s20, 5
    %s22 = scalar_select %p21, %s20, 5
    %s23 = smul.addr %s22, 2
    %s24 = scalar_lea.vmem %s1, %s23
    %s25 = sadd.s32 0, 0
    %s26 = smul.u32 6, %s25
  $region9: #{point_to_point_loss.1} parent=0 // pred_fallthru
    _
  // Predicated region
  $region10: #{point_to_point_loss.1} parent=0 // pred_check
    _
  $region11: #{point_to_point_loss.1} parent=0 // pred_check_branch
    %28 = sbr.rel (0) target = $region13
  $region12: #{point_to_point_loss.1} parent=0 // pred_region
    %s29 = sadd.s32 0, 0
    %s30 = smul.u32 6, %s29
    %p31 = scmp.lt.s32.totalorder %s30, 5
    %s32 = scalar_select %p31, %s30, 5
    %s33 = smul.addr %s32, 2
    %s34 = scalar_lea.vmem %s2, %s33
    %s35 = sadd.s32 0, 0
    %s36 = smul.u32 6, %s35
  $region13: #{point_to_point_loss.1} parent=0 // pred_fallthru
    _
  %s37 = sadd.s32 0, 0
  %s38 = smul.u32 6, %s37
  %p39 = scmp.lt.s32.totalorder %s38, 5
  %s40 = scalar_select %p39, %s38, 5
  %s41 = scalar_lea.vmem %s0, %s40
  %s42 = sadd.s32 0, 0
  %s43 = smul.u32 6, %s42
  %p44 = scmp.lt.s32.totalorder %s43, 5
  %s45 = scalar_select %p44, %s43, 5
  %s46 = smul.addr %s45, 2
  %s47 = scalar_lea.vmem %s1, %s46
  %s48 = sadd.s32 0, 0
  %s49 = smul.u32 6, %s48
  %p50 = scmp.lt.s32.totalorder %s49, 5
  %s51 = scalar_select %p50, %s49, 5
  %s52 = smul.addr %s51, 2
  %s53 = scalar_lea.vmem %s2, %s52
  %s54 = sadd.s32 0, 0
  %s55 = smul.u32 6, %s54
  %p56 = scmp.lt.s32.totalorder %s55, 5
  %s57 = scalar_select %p56, %s55, 5
  %s58 = scalar_lea.vmem %s0, %s57
  %s59 = sadd.s32 0, 0
  %s60 = smul.u32 6, %s59
  %s61 = sadd.s32 0, 0
  %s62 = smul.u32 6, %s61
  %p63 = scmp.lt.s32.totalorder %s62, 5
  %s64 = scalar_select %p63, %s62, 5
  %s65 = smul.addr %s64, 2
  %s66 = scalar_lea.vmem %s1, %s65
  %s67 = sadd.s32 0, 0
  %s68 = smul.u32 6, %s67
  %s69 = sadd.s32 0, 0
  %s70 = smul.u32 6, %s69
  %p71 = scmp.lt.s32.totalorder %s70, 5
  %s72 = scalar_select %p71, %s70, 5
  %s73 = smul.addr %s72, 2
  %s74 = scalar_lea.vmem %s2, %s73
  %s75 = sadd.s32 0, 0
  %s76 = smul.u32 6, %s75
  %p77 = scmp.eq.s32.totalorder 0, 0
  // Predicated region
  $region14: #{point_to_point_loss.1} parent=0 // pred_check
    %p78 = pneg %p77
  $region15: #{point_to_point_loss.1} parent=0 // pred_check_branch
    %80 = sbr.rel (%p78) target = $region17
  $region16: #{point_to_point_loss.1} parent=0 // pred_region
    %vm81 = vcmask 1024
    %82 = vst.msk [vmem:[%s3] sm:$0x3] %vm81, 0.0
  $region17: #{point_to_point_loss.1} parent=0 // pred_fallthru
    _
  %v83 = vld [vmem:[%s66] sm:$0xff]
  %v84 = vld [vmem:[%s66 + $0x8] sm:$0xf]
  %v85 = vld [vmem:[%s74] sm:$0xff]
  %v86 = vld [vmem:[%s74 + $0x8] sm:$0xf]
  %v87 = vsub.f32 %v83, %v85
  %v88 = vsub.f32 %v84, %v86
  %v89 = vld [vmem:[%s58] sm:$0x3f]
  %v91 = vlaneseq
  %v92 = vshrl.u32 %v91, 7
  %v93 = vsub.s32 0, %v92
  %v94 = vrot.slane %v89, %v93
  %v95 = vlaneseq
  %v96 = vshrl.u32 %v95, 7
  %v97 = vsub.s32 1, %v96
  %v98 = vrot.slane %v89, %v97
  %v99 = vlaneseq
  %v100 = vshrl.u32 %v99, 7
  %v101 = vsub.s32 2, %v100
  %v102 = vrot.slane %v89, %v101
  %v103 = vlaneseq
  %v104 = vshrl.u32 %v103, 7
  %v105 = vsub.s32 3, %v104
  %v106 = vrot.slane %v89, %v105
  %v107 = vlaneseq
  %v108 = vshrl.u32 %v107, 7
  %v109 = vsub.s32 4, %v108
  %v110 = vrot.slane %v89, %v109
  %v111 = vlaneseq
  %v112 = vshrl.u32 %v111, 7
  %v113 = vsub.s32 5, %v112
  %v114 = vrot.slane %v89, %v113
  %v123 = vcombine.high %v87, %v87
  %v125 = vunpack.c.l.s4 1983009808
  %v126 = vunpack.c.0.s8 %v125
  %v127 = vlaneseq
  %v128 = vshrl.u32 %v127, 7
  %v129 = vsub.s32 %v126, %v128
  %v130 = vrot.slane %v87, %v129
  %v132 = vunpack.c.l.s4 1983009808
  %v133 = vunpack.c.0.s8 %v132
  %v134 = vlaneseq
  %v135 = vshrl.u32 %v134, 7
  %v136 = vsub.s32 %v133, %v135
  %v137 = vrot.slane %v123, %v136
  %v138 = vcombine.high %v130, %v130
  %v139 = vcombine.high %v137, %v137
  %v141 = vunpack.c.l.s4 1983009808
  %v142 = vunpack.c.0.s8 %v141
  %v143 = vlaneseq
  %v144 = vshrl.u32 %v143, 7
  %v145 = vsub.s32 %v142, %v144
  %v146 = vrot.slane %v88, %v145
  %v147 = vcombine.high %v146, %v146
  %v154 = vmul.f32 %v94, %v130
  %v155 = vmul.f32 %v98, %v138
  %v156 = vmul.f32 %v102, %v137
  %v157 = vmul.f32 %v106, %v139
  %v158 = vmul.f32 %v110, %v146
  %v159 = vmul.f32 %v114, %v147
  %v160 = vmul.f32 %v154, %v130
  %v161 = vmul.f32 %v155, %v138
  %v162 = vmul.f32 %v156, %v137
  %v163 = vmul.f32 %v157, %v139
  %v164 = vmul.f32 %v158, %v146
  %v165 = vmul.f32 %v159, %v147
  %v166 = vld [vmem:[%s3] sm:$0x3]
  %vm167 = vcmask 1041408
  %v168 = vsel %vm167, %v160, 0.0
  %v169 = vsel %vm167, %v161, 0.0
  %v170 = vadd.f32 %v168, %v169
  %v171 = vsel %vm167, %v162, 0.0
  %v172 = vadd.f32 %v170, %v171
  %v173 = vsel %vm167, %v163, 0.0
  %v174 = vadd.f32 %v172, %v173
  %v175 = vsel %vm167, %v164, 0.0
  %v176 = vadd.f32 %v174, %v175
  %v177 = vsel %vm167, %v165, 0.0
  %v178 = vadd.f32 %v176, %v177
  %179 = vadd.xlane.f32.xlu0 %v178
  %v180 = vpop.xlane.xlu0 %179
  %v181 = vadd.f32 %v166, %v180
  %vm182 = vcmask 1024
  %183 = vst.msk [vmem:[%s3] sm:$0x3] %vm182, %v181
  // Predicated region
  $region18: #{point_to_point_loss.1} parent=0 // pred_check
    _
  $region19: #{point_to_point_loss.1} parent=0 // pred_check_branch
    %185 = sbr.rel (0) target = $region21
  $region20: #{point_to_point_loss.1} parent=0 // pred_region
    _
  $region21: #{point_to_point_loss.1} parent=0 // pred_fallthru
    _
  // Predicated region
  $region22: #{point_to_point_loss.1} parent=0 // pred_check
    _
  $region23: #{point_to_point_loss.1} parent=0 // pred_check_branch
    %187 = sbr.rel (0) target = $region25
  $region24: #{point_to_point_loss.1} parent=0 // pred_region
    _
  $region25: #{point_to_point_loss.1} parent=0 // pred_fallthru
    _

</llo_original>
